<compile_context>
chip_gen: v6e
topology: v6e:2x2x1
jax: 0.10.0
libtpu: 0.0.40
codegen_flags: <defaults>
</compile_context>

<pallas_src>
import functools
import math

import jax
import jax.numpy as jnp
from jax.experimental import pallas as pl
from jax.experimental.pallas import tpu as pltpu


def _concat_dma_kernel(sizes, dim, *refs):
    """refs = (*in_refs, out_ref, dma_sems).

    Issues one HBM->HBM DMA per input into its slab of the output along
    `dim`, then waits on all of them.  All offsets are static, so each copy
    is a single strided DMA descriptor; no vector load/store slots are used.
    """
    n_in = len(sizes)
    in_refs = refs[:n_in]
    out_ref = refs[n_in]
    sems = refs[n_in + 1]

    ndim = len(out_ref.shape)
    copies = []
    off = 0
    for i, (r, c) in enumerate(zip(in_refs, sizes)):
        idx = tuple(
            slice(off, off + c) if d == dim else slice(None) for d in range(ndim)
        )
        cp = pltpu.make_async_copy(r, out_ref.at[idx], sems.at[i])
        cp.start()
        copies.append(cp)
        off += c
    for cp in copies:
        cp.wait()


def _concat_pallas(xs, dim):
    dtype = xs[0].dtype
    base = xs[0].shape
    sizes = tuple(int(x.shape[dim]) for x in xs)
    out_dims = list(base)
    out_dims[dim] = sum(sizes)
    out_shape = jax.ShapeDtypeStruct(tuple(out_dims), dtype)

    kernel = functools.partial(_concat_dma_kernel, sizes, dim)

    return pl.pallas_call(
        kernel,
        out_shape=out_shape,
        # Pure-DMA path: everything stays in HBM, no auto-pipelining needed,
        # no grid (megacore split gives zero bandwidth gain on an HBM-bound
        # byte copy and would only add per-step overhead).
        in_specs=[pl.BlockSpec(memory_space=pl.ANY)] * len(xs),
        out_specs=pl.BlockSpec(memory_space=pl.ANY),
        scratch_shapes=[pltpu.SemaphoreType.DMA((len(xs),))],
    )(*xs)


def _default_min_pallas_bytes():
    """Bandwidth-aware Pallas dispatch threshold.

    Below this size the DMA itself (~0.3 us on v7x, ~2.5 us on v5e per MiB)
    is dwarfed by custom-call launch overhead and the lost ability of XLA to
    fuse the concat into its consumer, so jnp.concatenate wins.  The
    crossover scales with HBM bandwidth, hence the per-generation values.
    """
    try:
        kind = jax.devices()[0].device_kind.lower()
    except Exception:
        return 8 << 20
    if "v7" in kind:
        return 24 << 20   # ~3.2 TB/s HBM
    if "v6" in kind:
        return 8 << 20    # ~1.4 TB/s HBM
    return 4 << 20        # v5e and older, ~0.8 TB/s HBM


def concat(xs, dimension: int = 1, *, min_pallas_bytes=None, force_pallas: bool = False):
    """Pallas equivalent of Concat(dimension).forward(xs).

    Dispatch policy (per perf review): small inputs, unaligned tiled-dim
    concats and very short fragmented slabs go to jnp.concatenate (XLA can
    fuse/elide those); large aligned concats run the HBM->HBM DMA kernel,
    with a lane-dense 2D view when the minor dim is lane-sparse.
    """
    xs = list(xs)
    assert len(xs) >= 1
    ndim = xs[0].ndim
    dim = dimension % ndim
    dtype = xs[0].dtype
    for x in xs:
        assert x.ndim == ndim and x.dtype == dtype
        for d in range(ndim):
            if d != dim:
                assert x.shape[d] == xs[0].shape[d]

    # Drop zero-length inputs along the concat dim: they contribute no bytes
    # and would otherwise emit zero-length DMA descriptors.
    nonempty = [x for x in xs if x.shape[dim] > 0]
    if not nonempty:
        return jnp.concatenate(xs, axis=dim)
    if len(nonempty) == 1:
        return nonempty[0]
    xs = nonempty

    base = xs[0].shape
    sizes = [int(x.shape[dim]) for x in xs]
    itemsize = dtype.itemsize

    total_bytes = sum(int(x.size) * itemsize for x in xs)
    if min_pallas_bytes is None:
        min_pallas_bytes = _default_min_pallas_bytes()
    if not force_pallas and total_bytes < min_pallas_bytes:
        return jnp.concatenate(xs, axis=dim)

    lead = math.prod(base[:dim]) if dim > 0 else 1
    inner = math.prod(base[dim + 1:]) if dim < ndim - 1 else 1
    slabs = [s * inner for s in sizes]

    # Lane-dense 2D view: if the output minor dim is lane-sparse (not a
    # multiple of 128 lanes) but every per-input slab is a multiple of 128,
    # concatenating (lead, size_i*inner) views along the last axis is
    # semantically identical and gives dense, 128-aligned lane bursts for
    # the DMA instead of (8,128)-tile-padded partial-tile writes.
    out_last = base[-1] if dim != ndim - 1 else sum(sizes)
    lane_sparse = (out_last % 128) != 0
    can_flatten = all(s % 128 == 0 for s in slabs)
    if can_flatten and (lane_sparse or ndim == 1):
        xs2 = [x.reshape(lead, s) for x, s in zip(xs, slabs)]
        out2 = _concat_pallas(xs2, dim=1)
        out_dims = list(base)
        out_dims[dim] = sum(sizes)
        return out2.reshape(tuple(out_dims))

    # Alignment guard: HBM arrays are (8,128)-tiled on the last two dims.
    # A raw HBM->HBM DMA into a slice of a tiled dim is only efficient (or
    # even guaranteed to lower) when sizes/offsets are tile-aligned.
    if dim >= ndim - 2:
        if dim == ndim - 1:
            tile = 128                                  # lane tile
        else:
            tile = 8 * max(1, 4 // itemsize)            # 8 f32 / 16 bf16 / 32 int8
        if not all(s % tile == 0 for s in sizes):
            # TODO(synk): add a BlockSpec auto-pipelined VMEM copy kernel for
            # this unaligned / short-run regime instead of deferring to XLA.
            return jnp.concatenate(xs, axis=dim)

    # Short-fragmented-run guard: many tiny strided bursts underutilize the
    # DMA engines / HBM; a fused XLA copy wins there.
    min_run_bytes = min(slabs) * itemsize
    if not force_pallas and min_run_bytes < 1024:
        return jnp.concatenate(xs, axis=dim)

    return _concat_pallas(xs, dim)


if __name__ == "__main__":
    key = jax.random.PRNGKey(0)
    k1, k2, k3, k4, k5 = jax.random.split(key, 5)

    # --- Case A: NCHW with lane-sparse minor dim (W=16) and 128-multiple
    # slabs -> lane-dense 2D flatten + HBM->HBM DMA path.  Includes a
    # zero-channel input that must be filtered out.
    x1 = jax.random.normal(k1, (2, 4, 16, 16), dtype=jnp.float32)
    x2 = jax.random.normal(k2, (2, 6, 16, 16), dtype=jnp.float32)
    x3 = jax.random.normal(k3, (2, 2, 16, 16), dtype=jnp.float32)
    x0 = jnp.zeros((2, 0, 16, 16), dtype=jnp.float32)

    out_a = concat([x1, x0, x2, x3], dimension=1, force_pallas=True)
    out_a = jax.block_until_ready(out_a)
    ref_a = jnp.concatenate([x1, x0, x2, x3], axis=1)
    assert out_a.shape == (2, 12, 16, 16)
    assert jnp.array_equal(out_a, ref_a)

    # --- Case B: slabs not multiples of 128 but concat dim is not one of the
    # tiled minor dims -> original-shape (4D) HBM->HBM DMA path.
    x4 = jax.random.normal(k4, (2, 3, 16, 20), dtype=jnp.float32)
    x5 = jax.random.normal(k5, (2, 5, 16, 20), dtype=jnp.float32)
    out_b = concat([x4, x5], dimension=1, force_pallas=True)
    out_b = jax.block_until_ready(out_b)
    ref_b = jnp.concatenate([x4, x5], axis=1)
    assert out_b.shape == (2, 8, 16, 20)
    assert jnp.array_equal(out_b, ref_b)

    # --- Case C: tiny inputs without force -> fusion-friendly jnp fallback.
    out_c = concat([x1, x2], dimension=1)
    out_c = jax.block_until_ready(out_c)
    assert jnp.array_equal(out_c, jnp.concatenate([x1, x2], axis=1))

    print("KERNEL_OK")
</pallas_src>

<mosaic_0001>
module attributes {stable_mosaic.version = 11 : i64} {
  func.func @_concat_dma_kernel(%arg0: memref<2x1024xf32, #tpu.memory_space<any>>, %arg1: memref<2x1536xf32, #tpu.memory_space<any>>, %arg2: memref<2x512xf32, #tpu.memory_space<any>>, %arg3: memref<2x3072xf32, #tpu.memory_space<any>>, %arg4: memref<3x!tpu.dma_semaphore, #tpu.memory_space<semaphore_mem>>) attributes {dimension_semantics = [], scalar_prefetch = 0 : i64, scratch_operands = 1 : i64, tpu.core_type = #tpu.core_type<tc>} {
    %c0_i32 = arith.constant 0 : i32
    %c0_i32_0 = arith.constant 0 : i32
    %c0_i32_1 = arith.constant 0 : i32
    %0 = tpu.memref_slice %arg3[%c0_i32_0, %c0_i32_1] : memref<2x3072xf32, #tpu.memory_space<any>> -> memref<2x1024xf32, #tpu.memory_space<any>>
    %1 = tpu.memref_slice %arg4[%c0_i32] : memref<3x!tpu.dma_semaphore, #tpu.memory_space<semaphore_mem>> -> memref<1x!tpu.dma_semaphore, #tpu.memory_space<semaphore_mem>>
    %2 = tpu.memref_squeeze %1 : memref<1x!tpu.dma_semaphore, #tpu.memory_space<semaphore_mem>> -> memref<!tpu.dma_semaphore, #tpu.memory_space<semaphore_mem>>
    tpu.enqueue_dma source(%arg0 : memref<2x1024xf32, #tpu.memory_space<any>>) target(%0 : memref<2x1024xf32, #tpu.memory_space<any>>) target_semaphore(%2 : memref<!tpu.dma_semaphore, #tpu.memory_space<semaphore_mem>>)
    %c1_i32 = arith.constant 1 : i32
    %c0_i32_2 = arith.constant 0 : i32
    %c1024_i32 = arith.constant 1024 : i32
    %3 = tpu.memref_slice %arg3[%c0_i32_2, %c1024_i32] : memref<2x3072xf32, #tpu.memory_space<any>> -> memref<2x1536xf32, #tpu.memory_space<any>>
    %4 = tpu.memref_slice %arg4[%c1_i32] : memref<3x!tpu.dma_semaphore, #tpu.memory_space<semaphore_mem>> -> memref<1x!tpu.dma_semaphore, #tpu.memory_space<semaphore_mem>>
    %5 = tpu.memref_squeeze %4 : memref<1x!tpu.dma_semaphore, #tpu.memory_space<semaphore_mem>> -> memref<!tpu.dma_semaphore, #tpu.memory_space<semaphore_mem>>
    tpu.enqueue_dma source(%arg1 : memref<2x1536xf32, #tpu.memory_space<any>>) target(%3 : memref<2x1536xf32, #tpu.memory_space<any>>) target_semaphore(%5 : memref<!tpu.dma_semaphore, #tpu.memory_space<semaphore_mem>>)
    %c2_i32 = arith.constant 2 : i32
    %c0_i32_3 = arith.constant 0 : i32
    %c2560_i32 = arith.constant 2560 : i32
    %6 = tpu.memref_slice %arg3[%c0_i32_3, %c2560_i32] : memref<2x3072xf32, #tpu.memory_space<any>> -> memref<2x512xf32, #tpu.memory_space<any>>
    %7 = tpu.memref_slice %arg4[%c2_i32] : memref<3x!tpu.dma_semaphore, #tpu.memory_space<semaphore_mem>> -> memref<1x!tpu.dma_semaphore, #tpu.memory_space<semaphore_mem>>
    %8 = tpu.memref_squeeze %7 : memref<1x!tpu.dma_semaphore, #tpu.memory_space<semaphore_mem>> -> memref<!tpu.dma_semaphore, #tpu.memory_space<semaphore_mem>>
    tpu.enqueue_dma source(%arg2 : memref<2x512xf32, #tpu.memory_space<any>>) target(%6 : memref<2x512xf32, #tpu.memory_space<any>>) target_semaphore(%8 : memref<!tpu.dma_semaphore, #tpu.memory_space<semaphore_mem>>)
    %c0_i32_4 = arith.constant 0 : i32
    %c0_i32_5 = arith.constant 0 : i32
    %c0_i32_6 = arith.constant 0 : i32
    %9 = tpu.memref_slice %arg3[%c0_i32_5, %c0_i32_6] : memref<2x3072xf32, #tpu.memory_space<any>> -> memref<2x1024xf32, #tpu.memory_space<any>>
    %10 = tpu.memref_slice %arg4[%c0_i32_4] : memref<3x!tpu.dma_semaphore, #tpu.memory_space<semaphore_mem>> -> memref<1x!tpu.dma_semaphore, #tpu.memory_space<semaphore_mem>>
    %11 = tpu.memref_squeeze %10 : memref<1x!tpu.dma_semaphore, #tpu.memory_space<semaphore_mem>> -> memref<!tpu.dma_semaphore, #tpu.memory_space<semaphore_mem>>
    tpu.wait_dma2 semaphore(%11 : memref<!tpu.dma_semaphore, #tpu.memory_space<semaphore_mem>>) src(%arg0 : memref<2x1024xf32, #tpu.memory_space<any>>) dst(%9 : memref<2x1024xf32, #tpu.memory_space<any>>)
    %c1_i32_7 = arith.constant 1 : i32
    %c0_i32_8 = arith.constant 0 : i32
    %c1024_i32_9 = arith.constant 1024 : i32
    %12 = tpu.memref_slice %arg3[%c0_i32_8, %c1024_i32_9] : memref<2x3072xf32, #tpu.memory_space<any>> -> memref<2x1536xf32, #tpu.memory_space<any>>
    %13 = tpu.memref_slice %arg4[%c1_i32_7] : memref<3x!tpu.dma_semaphore, #tpu.memory_space<semaphore_mem>> -> memref<1x!tpu.dma_semaphore, #tpu.memory_space<semaphore_mem>>
    %14 = tpu.memref_squeeze %13 : memref<1x!tpu.dma_semaphore, #tpu.memory_space<semaphore_mem>> -> memref<!tpu.dma_semaphore, #tpu.memory_space<semaphore_mem>>
    tpu.wait_dma2 semaphore(%14 : memref<!tpu.dma_semaphore, #tpu.memory_space<semaphore_mem>>) src(%arg1 : memref<2x1536xf32, #tpu.memory_space<any>>) dst(%12 : memref<2x1536xf32, #tpu.memory_space<any>>)
    %c2_i32_10 = arith.constant 2 : i32
    %c0_i32_11 = arith.constant 0 : i32
    %c2560_i32_12 = arith.constant 2560 : i32
    %15 = tpu.memref_slice %arg3[%c0_i32_11, %c2560_i32_12] : memref<2x3072xf32, #tpu.memory_space<any>> -> memref<2x512xf32, #tpu.memory_space<any>>
    %16 = tpu.memref_slice %arg4[%c2_i32_10] : memref<3x!tpu.dma_semaphore, #tpu.memory_space<semaphore_mem>> -> memref<1x!tpu.dma_semaphore, #tpu.memory_space<semaphore_mem>>
    %17 = tpu.memref_squeeze %16 : memref<1x!tpu.dma_semaphore, #tpu.memory_space<semaphore_mem>> -> memref<!tpu.dma_semaphore, #tpu.memory_space<semaphore_mem>>
    tpu.wait_dma2 semaphore(%17 : memref<!tpu.dma_semaphore, #tpu.memory_space<semaphore_mem>>) src(%arg2 : memref<2x512xf32, #tpu.memory_space<any>>) dst(%15 : memref<2x512xf32, #tpu.memory_space<any>>)
    return
  }
}

</mosaic_0001>

<llo_original>
// kernel: tpu_custom_call.1
$region0: #{tpu_custom_call.1}
  #allocation0 [shape = 'u32[]', space=smem, size = 0x4, offset = 0x4, fixed_abs, tag = 'smem constant byte address 0x4 - core index']
  #allocation1 [shape = 'u32[144,128]{1,0:T(1,128)}', space=vmem, size = 0x12000, scoped, tag = 'internal scratch']
  #allocation2 [shape = 's32[3]{0}', space=sflag, size = 0xc, scoped, tag = 'scratch operand']
  #allocation3 [shape = 's32[]', space=sflag, size = 0x4, offset = 0, fixed_abs, tag = 'sflag constant byte address 0x0 - dummy sync flag']
  #allocation4 [shape = 'u32[0]{0}', space=smem, size = 0, offset = 0, fixed_abs, tag = 'smem constant byte address 0x0 - null']
  #allocation5 [shape = 's32[]', space=sflag, size = 0x4, offset = 0, fixed_abs, tag = 'sflag constant byte address 0x0 - dummy sync flag']
  #allocation6 [shape = 'u32[0]{0}', space=smem, size = 0, offset = 0, fixed_abs, tag = 'smem constant byte address 0x0 - null']
  #allocation7 [shape = 's32[]', space=sflag, size = 0x4, offset = 0, fixed_abs, tag = 'sflag constant byte address 0x0 - dummy sync flag']
  #allocation8 [shape = 'u32[0]{0}', space=smem, size = 0, offset = 0, fixed_abs, tag = 'smem constant byte address 0x0 - null']
  %s0 = inlined_call_operand.hbm [shape: f32[2,1024], index: 0, kind: input, shape index: {}]
  %s1 = inlined_call_operand.hbm [shape: f32[2,1536], index: 1, kind: input, shape index: {}]
  %s2 = inlined_call_operand.hbm [shape: f32[2,512], index: 2, kind: input, shape index: {}]
  %s3 = inlined_call_operand.hbm [shape: f32[2,3072], index: 3, kind: output, shape index: {}]
  %s4 = sld [smem:[#allocation0]]
  $region2: #{tpu_custom_call.1} parent=0
    _
  %s6 = ssub.s32 1, %s4
  %s7 = scalar_select 0, %s6, %s4
  %s9 = sshll.u32 1, 14
  %s10 = sxor.u32 4294967295, %s9
  %14 = dma.general %s0, 256, %s3, [#allocation2], 131072, [#allocation4], 0, 0
  %s15 = scalar_lea.hbm %s3, 256
  %s16 = scalar_lea.sflag [#allocation2], 1
  %s18 = sshll.u32 1, 14
  %s19 = sxor.u32 4294967295, %s18
  %23 = dma.general %s1, 384, %s15, %s16, 131072, [#allocation6], 0, 0
  %s24 = scalar_lea.hbm %s3, 640
  %s25 = scalar_lea.sflag [#allocation2], 2
  %s27 = sshll.u32 1, 14
  %s28 = sxor.u32 4294967295, %s27
  %32 = dma.general %s2, 128, %s24, %s25, 131072, [#allocation8], 0, 0
  %s33 = smul.u32 2, 1
  %s34 = smul.u32 %s33, 8
  %s35 = sshll.u32 %s34, 4
  %36 = dma.done [#allocation2], %s35
  %s37 = smul.u32 %s33, 12
  %s38 = sshll.u32 %s37, 4
  %39 = dma.done %s16, %s38
  %s40 = smul.u32 %s33, 4
  %s41 = sshll.u32 %s40, 4
  %42 = dma.done %s25, %s41
  %43 = vsyncmov [#allocation2]
  %s44 = vpop.sfrf %43
  %p45 = scmp.eq.s32.totalorder %s44, 0
  %p46 = pneg %p45
  %48 = shalt.err (%p46)
  %s49 = scalar_lea.sflag [#allocation2], 1
  %50 = vsyncmov %s49
  %s51 = vpop.sfrf %50
  %p52 = scmp.eq.s32.totalorder %s51, 0
  %p53 = pneg %p52
  %55 = shalt.err (%p53)
  %s56 = scalar_lea.sflag [#allocation2], 2
  %57 = vsyncmov %s56
  %s58 = vpop.sfrf %57
  %p59 = scmp.eq.s32.totalorder %s58, 0
  %p60 = pneg %p59
  %62 = shalt.err (%p60)

</llo_original>
